<compile_context>
chip_gen: v5e
topology: v5e:2x2
jax: 0.10.0
libtpu: 0.0.40
codegen_flags: <defaults>
</compile_context>

<pallas_src>
import jax
import jax.numpy as jnp
from jax import lax
from jax.experimental import pallas as pl
from jax.experimental.pallas import tpu as pltpu


def _rup(x, m):
    return -(-x // m) * m


def _pick_row_tile(Ho, Wo, tm_cap=1024):
    """Largest divisor TH of Ho with TH*Wo a multiple of 128 and TH*Wo <= tm_cap;
    if only larger ones exist, the smallest lane-aligned one; None if none exist."""
    cands = [d for d in range(1, Ho + 1) if Ho % d == 0 and (d * Wo) % 128 == 0]
    if not cands:
        return None
    small = [d for d in cands if d * Wo <= tm_cap]
    return max(small) if small else min(cands)


def conv3x3s2_bn_relu(x, conv_w, bn_gamma, bn_beta, bn_mean, bn_var,
                      eps=1e-5, out_dtype=jnp.float32):
    """x: (N, Cin, H, W) f32 NCHW.  conv_w: (Cout, Cin, 3, 3).
    Returns (N, Cout, H//2, W//2) out_dtype = relu(BN(conv(x)))."""
    N, Cin, H, W = x.shape
    Cout = conv_w.shape[0]
    assert H % 2 == 0 and W % 2 == 0, "this path assumes even H, W"
    Ho, Wo = H // 2, W // 2

    # ---- tile selection: lane-dense TM (multiple of 128), as large as reasonable ----
    TH = _pick_row_tile(Ho, Wo)
    if TH is None:                       # no lane-aligned row tile: whole image, pad M
        TH, n_m = Ho, 1
        TM = _rup(Ho * Wo, 128)
    else:
        n_m = Ho // TH
        TM = TH * Wo
    M_out = n_m * TM                     # padded pixel count stored by the kernel
    Lb = TM + Wo                         # per-tile flattened length incl. 1-row halo

    # ---- fold BN (inference) into conv weights and a per-channel bias ----
    scale = bn_gamma / jnp.sqrt(bn_var + eps)                       # (Cout,)
    bias = (bn_beta - bn_mean * scale).reshape(Cout, 1).astype(jnp.float32)
    w_folded = conv_w * scale[:, None, None, None]                  # (Cout, Cin, 3, 3)
    # (9, Cout, Cin): tap-major so each tap slice is a leading-dim index (aligned)
    w3 = jnp.transpose(w_folded, (2, 3, 0, 1)).reshape(9, Cout, Cin).astype(jnp.bfloat16)

    # ---- wrapper layout pass: stride-2 tap variants with a flattened pixel axis ----
    # Tap (kh, kw) of output pixel (oh, ow) reads x_pad[c, 2*oh + kh, 2*ow + kw].
    #   rows:  kh=0 -> even rows (rv=0, dh=0); kh=1 -> odd rows (rv=1, dh=0);
    #          kh=2 -> even rows shifted one phase-row (rv=0, dh=1)
    #   cols:  kw -> column-variant cv=kw, each already Wo wide with pitch Wo
    # so in the flattened (row*Wo + col) axis every tap is a contiguous slice at a
    # STATIC offset dh*Wo inside its row tile -> zero in-kernel assembly.
    x_pad = jnp.pad(x, ((0, 0), (0, 0), (1, 1), (1, 1)))            # (N, Cin, H+2, W+2)
    xr = jnp.stack([x_pad[:, :, 0::2, :], x_pad[:, :, 1::2, :]], axis=1)   # (N,2,Cin,Ho+1,W+2)
    xc = jnp.stack([xr[..., 0:W:2], xr[..., 1:W + 1:2], xr[..., 2:W + 2:2]],
                   axis=2)                                           # (N,2,3,Cin,Ho+1,Wo)
    # row tiles of TH output rows plus a 1-row halo (for the dh=1 taps)
    xt = jnp.stack([xc[:, :, :, :, t * TH: t * TH + TH + 1, :] for t in range(n_m)],
                   axis=3)                                           # (N,2,3,n_m,Cin,TH+1,Wo)
    xt = xt.reshape(N, 2, 3, n_m, Cin, (TH + 1) * Wo)
    if (TH + 1) * Wo < Lb:               # only in the padded-M fallback case
        xt = jnp.pad(xt, ((0, 0),) * 5 + ((0, Lb - (TH + 1) * Wo),))
    xt = xt.astype(jnp.bfloat16)

    def kernel(xt_ref, w_ref, b_ref, o_ref):
        # xt_ref: (2, 3, Cin, Lb) bf16    -- this row-tile's flattened tap sources
        # w_ref:  (9, Cout, Cin) bf16     b_ref: (Cout, 1) f32
        # o_ref:  (Cout, TM)
        acc = None
        for kh in range(3):
            rv, dh = kh % 2, kh // 2
            for kw in range(3):
                tap = kh * 3 + kw
                # static, contiguous slice of the flattened pixel axis
                rhs = xt_ref[rv, kw, :, dh * Wo: dh * Wo + TM]       # (Cin, TM) bf16
                p = jnp.dot(w_ref[tap], rhs, preferred_element_type=jnp.float32)
                acc = p if acc is None else acc + p
        y = acc + b_ref[...]                                          # f32 epilogue
        o_ref[...] = jnp.maximum(y, 0.0).astype(o_ref.dtype)

    # ---- VMEM accounting from actual (double-buffered) block sizes ----
    out_isz = jnp.dtype(out_dtype).itemsize
    in_b = 2 * 3 * _rup(Cin, 16) * _rup(Lb, 128) * 2
    w_b = 9 * _rup(Cout, 16) * _rup(Cin, 128) * 2
    bias_b = _rup(Cout, 8) * 128 * 4
    out_b = _rup(Cout, 32 // out_isz) * _rup(TM, 128) * out_isz
    vmem_limit = int(2 * (in_b + w_b + bias_b + out_b) + (8 << 20))

    out = pl.pallas_call(
        kernel,
        out_shape=jax.ShapeDtypeStruct((N, Cout, M_out), out_dtype),
        grid=(N, n_m),
        in_specs=[
            # only the current row tile (+halo) is DMA'd per grid step
            pl.BlockSpec((None, 2, 3, None, Cin, Lb),
                         lambda b, t: (b, 0, 0, t, 0, 0)),
            pl.BlockSpec((9, Cout, Cin), lambda b, t: (0, 0, 0)),
            pl.BlockSpec((Cout, 1), lambda b, t: (0, 0)),
        ],
        # lane-dense output block (TM % 128 == 0), already NCHW per image
        out_specs=pl.BlockSpec((None, Cout, TM), lambda b, t: (b, 0, t)),
        compiler_params=pltpu.CompilerParams(
            dimension_semantics=("parallel", "parallel"),
            vmem_limit_bytes=vmem_limit),
    )(xt, w3, bias)

    # drop padded pixels (no-op when Ho*Wo is already lane-aligned) and un-flatten
    return out[:, :, :Ho * Wo].reshape(N, Cout, Ho, Wo)


if __name__ == "__main__":
    N, Cin, H, W = 2, 4, 16, 16
    Cout = 32

    key = jax.random.PRNGKey(0)
    kx, kw, kg, kb, km, kv = jax.random.split(key, 6)

    x = jax.random.normal(kx, (N, Cin, H, W), dtype=jnp.float32)
    conv_w = jax.random.normal(kw, (Cout, Cin, 3, 3), dtype=jnp.float32) * 0.1
    bn_gamma = 1.0 + 0.1 * jax.random.normal(kg, (Cout,), dtype=jnp.float32)
    bn_beta = 0.1 * jax.random.normal(kb, (Cout,), dtype=jnp.float32)
    bn_mean = 0.1 * jax.random.normal(km, (Cout,), dtype=jnp.float32)
    bn_var = jnp.abs(jax.random.normal(kv, (Cout,), dtype=jnp.float32)) + 0.5

    out = conv3x3s2_bn_relu(x, conv_w, bn_gamma, bn_beta, bn_mean, bn_var)
    out = jax.block_until_ready(out)

    # Reference: XLA conv on the same bf16-rounded operands, folded BN, ReLU (NCHW).
    s = bn_gamma / jnp.sqrt(bn_var + 1e-5)
    b = bn_beta - bn_mean * s
    w_folded_bf = (conv_w * s[:, None, None, None]).astype(jnp.bfloat16).astype(jnp.float32)
    x_bf = x.astype(jnp.bfloat16).astype(jnp.float32)
    ref = lax.conv_general_dilated(
        x_bf, w_folded_bf, window_strides=(2, 2), padding=((1, 1), (1, 1)),
        dimension_numbers=("NCHW", "OIHW", "NCHW"))
    ref = jnp.maximum(ref + b[None, :, None, None], 0.0)

    assert out.shape == (N, Cout, H // 2, W // 2)
    err = float(jnp.max(jnp.abs(out - ref)))
    assert jnp.allclose(out, ref, atol=2e-3, rtol=2e-3), f"max abs err = {err}"
    print("KERNEL_OK")
</pallas_src>

<mosaic_0001>
module attributes {stable_mosaic.version = 11 : i64} {
  func.func @kernel(%arg0: i32, %arg1: i32, %arg2: memref<1x2x3x1x4x136xbf16, #tpu.memory_space<vmem>>, %arg3: memref<9x32x4xbf16, #tpu.memory_space<vmem>>, %arg4: memref<32x1xf32, #tpu.memory_space<vmem>>, %arg5: memref<1x32x128xf32, #tpu.memory_space<vmem>>) attributes {dimension_semantics = [#tpu.dimension_semantics<parallel>, #tpu.dimension_semantics<parallel>], iteration_bounds = array<i64: 2, 1>, scalar_prefetch = 0 : i64, scratch_operands = 0 : i64, tpu.core_type = #tpu.core_type<tc>, window_params = [{transform_indices = @transform_0, window_bounds = array<i64: 1, 2, 3, 1, 4, 136>}, {pipeline_mode = #tpu.pipeline_mode<synchronous>, transform_indices = @transform_1, window_bounds = array<i64: 9, 32, 4>}, {pipeline_mode = #tpu.pipeline_mode<synchronous>, transform_indices = @transform_2, window_bounds = array<i64: 32, 1>}, {transform_indices = @transform_3, window_bounds = array<i64: 1, 32, 128>}]} {
    %c0 = arith.constant 0 : index
    %c0_0 = arith.constant 0 : index
    %c0_1 = arith.constant 0 : index
    %c0_2 = arith.constant 0 : index
    %c0_3 = arith.constant 0 : index
    %c0_4 = arith.constant 0 : index
    %0 = vector.load %arg2[%c0, %c0_0, %c0_1, %c0_2, %c0_3, %c0_4] : memref<1x2x3x1x4x136xbf16, #tpu.memory_space<vmem>>, vector<1x1x1x1x4x128xbf16>
    %1 = vector.shape_cast %0 : vector<1x1x1x1x4x128xbf16> to vector<4x128xbf16>
    %c0_5 = arith.constant 0 : index
    %c0_6 = arith.constant 0 : index
    %c0_7 = arith.constant 0 : index
    %2 = vector.load %arg3[%c0_5, %c0_6, %c0_7] : memref<9x32x4xbf16, #tpu.memory_space<vmem>>, vector<1x32x4xbf16>
    %3 = vector.shape_cast %2 : vector<1x32x4xbf16> to vector<32x4xbf16>
    %cst = arith.constant dense<0.000000e+00> : vector<32x128xf32>
    %4 = tpu.matmul %3, %1, %cst {dimension_numbers = #tpu.dot_dimension_numbers<[1], [0], [0], [1], [0, 0, 1, 1], [], []>} : vector<32x4xbf16>, vector<4x128xbf16>, vector<32x128xf32> -> vector<32x128xf32>
    %c0_8 = arith.constant 0 : index
    %c0_9 = arith.constant 0 : index
    %c1 = arith.constant 1 : index
    %c0_10 = arith.constant 0 : index
    %c0_11 = arith.constant 0 : index
    %c0_12 = arith.constant 0 : index
    %5 = vector.load %arg2[%c0_8, %c0_9, %c1, %c0_10, %c0_11, %c0_12] : memref<1x2x3x1x4x136xbf16, #tpu.memory_space<vmem>>, vector<1x1x1x1x4x128xbf16>
    %6 = vector.shape_cast %5 : vector<1x1x1x1x4x128xbf16> to vector<4x128xbf16>
    %c1_13 = arith.constant 1 : index
    %c0_14 = arith.constant 0 : index
    %c0_15 = arith.constant 0 : index
    %7 = vector.load %arg3[%c1_13, %c0_14, %c0_15] : memref<9x32x4xbf16, #tpu.memory_space<vmem>>, vector<1x32x4xbf16>
    %8 = vector.shape_cast %7 : vector<1x32x4xbf16> to vector<32x4xbf16>
    %cst_16 = arith.constant dense<0.000000e+00> : vector<32x128xf32>
    %9 = tpu.matmul %8, %6, %cst_16 {dimension_numbers = #tpu.dot_dimension_numbers<[1], [0], [0], [1], [0, 0, 1, 1], [], []>} : vector<32x4xbf16>, vector<4x128xbf16>, vector<32x128xf32> -> vector<32x128xf32>
    %10 = arith.addf %4, %9 : vector<32x128xf32>
    %c0_17 = arith.constant 0 : index
    %c0_18 = arith.constant 0 : index
    %c2 = arith.constant 2 : index
    %c0_19 = arith.constant 0 : index
    %c0_20 = arith.constant 0 : index
    %c0_21 = arith.constant 0 : index
    %11 = vector.load %arg2[%c0_17, %c0_18, %c2, %c0_19, %c0_20, %c0_21] : memref<1x2x3x1x4x136xbf16, #tpu.memory_space<vmem>>, vector<1x1x1x1x4x128xbf16>
    %12 = vector.shape_cast %11 : vector<1x1x1x1x4x128xbf16> to vector<4x128xbf16>
    %c2_22 = arith.constant 2 : index
    %c0_23 = arith.constant 0 : index
    %c0_24 = arith.constant 0 : index
    %13 = vector.load %arg3[%c2_22, %c0_23, %c0_24] : memref<9x32x4xbf16, #tpu.memory_space<vmem>>, vector<1x32x4xbf16>
    %14 = vector.shape_cast %13 : vector<1x32x4xbf16> to vector<32x4xbf16>
    %cst_25 = arith.constant dense<0.000000e+00> : vector<32x128xf32>
    %15 = tpu.matmul %14, %12, %cst_25 {dimension_numbers = #tpu.dot_dimension_numbers<[1], [0], [0], [1], [0, 0, 1, 1], [], []>} : vector<32x4xbf16>, vector<4x128xbf16>, vector<32x128xf32> -> vector<32x128xf32>
    %16 = arith.addf %10, %15 : vector<32x128xf32>
    %c0_26 = arith.constant 0 : index
    %c1_27 = arith.constant 1 : index
    %c0_28 = arith.constant 0 : index
    %c0_29 = arith.constant 0 : index
    %c0_30 = arith.constant 0 : index
    %c0_31 = arith.constant 0 : index
    %17 = vector.load %arg2[%c0_26, %c1_27, %c0_28, %c0_29, %c0_30, %c0_31] : memref<1x2x3x1x4x136xbf16, #tpu.memory_space<vmem>>, vector<1x1x1x1x4x128xbf16>
    %18 = vector.shape_cast %17 : vector<1x1x1x1x4x128xbf16> to vector<4x128xbf16>
    %c3 = arith.constant 3 : index
    %c0_32 = arith.constant 0 : index
    %c0_33 = arith.constant 0 : index
    %19 = vector.load %arg3[%c3, %c0_32, %c0_33] : memref<9x32x4xbf16, #tpu.memory_space<vmem>>, vector<1x32x4xbf16>
    %20 = vector.shape_cast %19 : vector<1x32x4xbf16> to vector<32x4xbf16>
    %cst_34 = arith.constant dense<0.000000e+00> : vector<32x128xf32>
    %21 = tpu.matmul %20, %18, %cst_34 {dimension_numbers = #tpu.dot_dimension_numbers<[1], [0], [0], [1], [0, 0, 1, 1], [], []>} : vector<32x4xbf16>, vector<4x128xbf16>, vector<32x128xf32> -> vector<32x128xf32>
    %22 = arith.addf %16, %21 : vector<32x128xf32>
    %c0_35 = arith.constant 0 : index
    %c1_36 = arith.constant 1 : index
    %c1_37 = arith.constant 1 : index
    %c0_38 = arith.constant 0 : index
    %c0_39 = arith.constant 0 : index
    %c0_40 = arith.constant 0 : index
    %23 = vector.load %arg2[%c0_35, %c1_36, %c1_37, %c0_38, %c0_39, %c0_40] : memref<1x2x3x1x4x136xbf16, #tpu.memory_space<vmem>>, vector<1x1x1x1x4x128xbf16>
    %24 = vector.shape_cast %23 : vector<1x1x1x1x4x128xbf16> to vector<4x128xbf16>
    %c4 = arith.constant 4 : index
    %c0_41 = arith.constant 0 : index
    %c0_42 = arith.constant 0 : index
    %25 = vector.load %arg3[%c4, %c0_41, %c0_42] : memref<9x32x4xbf16, #tpu.memory_space<vmem>>, vector<1x32x4xbf16>
    %26 = vector.shape_cast %25 : vector<1x32x4xbf16> to vector<32x4xbf16>
    %cst_43 = arith.constant dense<0.000000e+00> : vector<32x128xf32>
    %27 = tpu.matmul %26, %24, %cst_43 {dimension_numbers = #tpu.dot_dimension_numbers<[1], [0], [0], [1], [0, 0, 1, 1], [], []>} : vector<32x4xbf16>, vector<4x128xbf16>, vector<32x128xf32> -> vector<32x128xf32>
    %28 = arith.addf %22, %27 : vector<32x128xf32>
    %c0_44 = arith.constant 0 : index
    %c1_45 = arith.constant 1 : index
    %c2_46 = arith.constant 2 : index
    %c0_47 = arith.constant 0 : index
    %c0_48 = arith.constant 0 : index
    %c0_49 = arith.constant 0 : index
    %29 = vector.load %arg2[%c0_44, %c1_45, %c2_46, %c0_47, %c0_48, %c0_49] : memref<1x2x3x1x4x136xbf16, #tpu.memory_space<vmem>>, vector<1x1x1x1x4x128xbf16>
    %30 = vector.shape_cast %29 : vector<1x1x1x1x4x128xbf16> to vector<4x128xbf16>
    %c5 = arith.constant 5 : index
    %c0_50 = arith.constant 0 : index
    %c0_51 = arith.constant 0 : index
    %31 = vector.load %arg3[%c5, %c0_50, %c0_51] : memref<9x32x4xbf16, #tpu.memory_space<vmem>>, vector<1x32x4xbf16>
    %32 = vector.shape_cast %31 : vector<1x32x4xbf16> to vector<32x4xbf16>
    %cst_52 = arith.constant dense<0.000000e+00> : vector<32x128xf32>
    %33 = tpu.matmul %32, %30, %cst_52 {dimension_numbers = #tpu.dot_dimension_numbers<[1], [0], [0], [1], [0, 0, 1, 1], [], []>} : vector<32x4xbf16>, vector<4x128xbf16>, vector<32x128xf32> -> vector<32x128xf32>
    %34 = arith.addf %28, %33 : vector<32x128xf32>
    %c0_53 = arith.constant 0 : index
    %c0_54 = arith.constant 0 : index
    %c0_55 = arith.constant 0 : index
    %c0_56 = arith.constant 0 : index
    %c0_57 = arith.constant 0 : index
    %c8 = arith.constant 8 : index
    %35 = vector.load %arg2[%c0_53, %c0_54, %c0_55, %c0_56, %c0_57, %c8] : memref<1x2x3x1x4x136xbf16, #tpu.memory_space<vmem>>, vector<1x1x1x1x4x128xbf16>
    %36 = vector.shape_cast %35 : vector<1x1x1x1x4x128xbf16> to vector<4x128xbf16>
    %c6 = arith.constant 6 : index
    %c0_58 = arith.constant 0 : index
    %c0_59 = arith.constant 0 : index
    %37 = vector.load %arg3[%c6, %c0_58, %c0_59] : memref<9x32x4xbf16, #tpu.memory_space<vmem>>, vector<1x32x4xbf16>
    %38 = vector.shape_cast %37 : vector<1x32x4xbf16> to vector<32x4xbf16>
    %cst_60 = arith.constant dense<0.000000e+00> : vector<32x128xf32>
    %39 = tpu.matmul %38, %36, %cst_60 {dimension_numbers = #tpu.dot_dimension_numbers<[1], [0], [0], [1], [0, 0, 1, 1], [], []>} : vector<32x4xbf16>, vector<4x128xbf16>, vector<32x128xf32> -> vector<32x128xf32>
    %40 = arith.addf %34, %39 : vector<32x128xf32>
    %c0_61 = arith.constant 0 : index
    %c0_62 = arith.constant 0 : index
    %c1_63 = arith.constant 1 : index
    %c0_64 = arith.constant 0 : index
    %c0_65 = arith.constant 0 : index
    %c8_66 = arith.constant 8 : index
    %41 = vector.load %arg2[%c0_61, %c0_62, %c1_63, %c0_64, %c0_65, %c8_66] : memref<1x2x3x1x4x136xbf16, #tpu.memory_space<vmem>>, vector<1x1x1x1x4x128xbf16>
    %42 = vector.shape_cast %41 : vector<1x1x1x1x4x128xbf16> to vector<4x128xbf16>
    %c7 = arith.constant 7 : index
    %c0_67 = arith.constant 0 : index
    %c0_68 = arith.constant 0 : index
    %43 = vector.load %arg3[%c7, %c0_67, %c0_68] : memref<9x32x4xbf16, #tpu.memory_space<vmem>>, vector<1x32x4xbf16>
    %44 = vector.shape_cast %43 : vector<1x32x4xbf16> to vector<32x4xbf16>
    %cst_69 = arith.constant dense<0.000000e+00> : vector<32x128xf32>
    %45 = tpu.matmul %44, %42, %cst_69 {dimension_numbers = #tpu.dot_dimension_numbers<[1], [0], [0], [1], [0, 0, 1, 1], [], []>} : vector<32x4xbf16>, vector<4x128xbf16>, vector<32x128xf32> -> vector<32x128xf32>
    %46 = arith.addf %40, %45 : vector<32x128xf32>
    %c0_70 = arith.constant 0 : index
    %c0_71 = arith.constant 0 : index
    %c2_72 = arith.constant 2 : index
    %c0_73 = arith.constant 0 : index
    %c0_74 = arith.constant 0 : index
    %c8_75 = arith.constant 8 : index
    %47 = vector.load %arg2[%c0_70, %c0_71, %c2_72, %c0_73, %c0_74, %c8_75] : memref<1x2x3x1x4x136xbf16, #tpu.memory_space<vmem>>, vector<1x1x1x1x4x128xbf16>
    %48 = vector.shape_cast %47 : vector<1x1x1x1x4x128xbf16> to vector<4x128xbf16>
    %c8_76 = arith.constant 8 : index
    %c0_77 = arith.constant 0 : index
    %c0_78 = arith.constant 0 : index
    %49 = vector.load %arg3[%c8_76, %c0_77, %c0_78] : memref<9x32x4xbf16, #tpu.memory_space<vmem>>, vector<1x32x4xbf16>
    %50 = vector.shape_cast %49 : vector<1x32x4xbf16> to vector<32x4xbf16>
    %cst_79 = arith.constant dense<0.000000e+00> : vector<32x128xf32>
    %51 = tpu.matmul %50, %48, %cst_79 {dimension_numbers = #tpu.dot_dimension_numbers<[1], [0], [0], [1], [0, 0, 1, 1], [], []>} : vector<32x4xbf16>, vector<4x128xbf16>, vector<32x128xf32> -> vector<32x128xf32>
    %52 = arith.addf %46, %51 : vector<32x128xf32>
    %c0_80 = arith.constant 0 : index
    %c0_81 = arith.constant 0 : index
    %53 = vector.load %arg4[%c0_80, %c0_81] : memref<32x1xf32, #tpu.memory_space<vmem>>, vector<32x1xf32>
    %54 = vector.broadcast %53 : vector<32x1xf32> to vector<32x128xf32>
    %55 = arith.addf %52, %54 : vector<32x128xf32>
    %cst_82 = arith.constant 0.000000e+00 : f32
    %56 = vector.broadcast %cst_82 : f32 to vector<32x128xf32>
    %57 = arith.maximumf %55, %56 : vector<32x128xf32>
    %c0_83 = arith.constant 0 : index
    %c0_84 = arith.constant 0 : index
    %c0_85 = arith.constant 0 : index
    %58 = vector.load %arg5[%c0_83, %c0_84, %c0_85] : memref<1x32x128xf32, #tpu.memory_space<vmem>>, vector<1x32x128xf32>
    %59 = vector.shape_cast %58 : vector<1x32x128xf32> to vector<32x128xf32>
    %60 = vector.shape_cast %57 : vector<32x128xf32> to vector<1x32x128xf32>
    tpu.vector_store %arg5[%c0_83, %c0_84, %c0_85], %60 {strides = array<i32>} : memref<1x32x128xf32, #tpu.memory_space<vmem>>, vector<1x32x128xf32>,
    return
  }
  func.func @transform_0(%arg0: i32, %arg1: i32) -> (i32, i32, i32, i32, i32, i32) {
    %c0_i32 = arith.constant 0 : i32
    %c0_i32_0 = arith.constant 0 : i32
    %c0_i32_1 = arith.constant 0 : i32
    %c0_i32_2 = arith.constant 0 : i32
    %c0_i32_3 = arith.constant 0 : i32
    return %arg0, %c0_i32, %c0_i32_0, %arg1, %c0_i32_1, %c0_i32_2 : i32, i32, i32, i32, i32, i32
  }
  func.func @transform_1(%arg0: i32, %arg1: i32) -> (i32, i32, i32) {
    %c0_i32 = arith.constant 0 : i32
    %c0_i32_0 = arith.constant 0 : i32
    %c0_i32_1 = arith.constant 0 : i32
    %c0_i32_2 = arith.constant 0 : i32
    return %c0_i32, %c0_i32_0, %c0_i32_1 : i32, i32, i32
  }
  func.func @transform_2(%arg0: i32, %arg1: i32) -> (i32, i32) {
    %c0_i32 = arith.constant 0 : i32
    %c0_i32_0 = arith.constant 0 : i32
    %c0_i32_1 = arith.constant 0 : i32
    return %c0_i32, %c0_i32_0 : i32, i32
  }
  func.func @transform_3(%arg0: i32, %arg1: i32) -> (i32, i32, i32) {
    %c0_i32 = arith.constant 0 : i32
    %c0_i32_0 = arith.constant 0 : i32
    return %arg0, %c0_i32, %arg1 : i32, i32, i32
  }
}

</mosaic_0001>

<llo_original>
// kernel: tpu_custom_call.1
$region0: #{tpu_custom_call.1}
  #allocation0 [shape = 'u32[]', space=smem, size = 0x4, offset = 0x4, fixed_abs, tag = 'smem constant byte address 0x4 - core index']
  #allocation1 [shape = 'u32[72,128]{1,0:T(1,128)}', space=vmem, size = 0x9000, scoped, tag = 'internal scratch']
  %s0 = inlined_call_operand.vmem [shape: bf16[2,2,3,1,4,136], index: 0, kind: input, shape index: {}]
  %s1 = inlined_call_operand.vmem [shape: bf16[9,32,4], index: 1, kind: input, shape index: {}]
  %s2 = inlined_call_operand.vmem [shape: f32[32,1], index: 2, kind: input, shape index: {}]
  %s3 = inlined_call_operand.hbm [shape: f32[2,32,128], index: 3, kind: output, shape index: {}]
  %s4 = sld [smem:[#allocation0]]
  $region45: #{tpu_custom_call.1} parent=0
    _
  %s6 = ssub.s32 1, %s4
  %s7 = scalar_select 0, %s6, %s4
  $region1: #{tpu_custom_call.1} parent=0
    #allocation2 [shape = 'u8[32768]{0}', space=vmem, size = 0x8000, scoped, tag = 'output window, operand 0']
    #allocation3 [shape = 's32[2]{0}', space=sflag, size = 0x8, scoped, tag = 'scoped memory for tpu_custom_call.1']
    %8 = vsyncpa [#allocation3], 0
    %s9 = scalar_lea.sflag [#allocation3], 1
    %10 = vsyncpa %s9, 0
    loop: start=0, step=1, limit=4
    $region2: #{tpu_custom_call.1} parent=1 // loop_pre_header
      _
    $region3: #{tpu_custom_call.1} parent=1 // loop_header
      %s12 = sphi 0, %s16
      %p13 = scmp.ge.s32.totalorder %s12, 4
      %s19 = sphi 0, %s31
      %s20 = sphi 0, %s27
      %s21 = sphi 0, %s19
      %s22 = sphi 0, %s20
      %s23 = sphi 0, %s21
      %s24 = sphi 0, %s22
      %s36 = sphi 0, %s38
      %s39 = sphi 0, %s36
      %s40 = sphi 0, %s39
      %s56 = sphi 0, %s40
      %s60 = sphi 0, %s60
      %s62 = sphi 0, %s60
      %s63 = sphi 0, %s62
      %s77 = sphi 0, %s63
      %s81 = sphi 0, %s81
      %s83 = sphi 0, %s81
      %s84 = sphi 0, %s83
      %s98 = sphi 0, %s84
      %s106 = sphi 0, %s108
      %s109 = sphi 0, %s106
      %s110 = sphi 0, %s109
      %s126 = sphi 0, %s110
    $region4: #{tpu_custom_call.1} parent=1 // loop_header_branch
      %15 = sbr.rel (%p13) target = $region8
    $region5: #{tpu_custom_call.1} parent=1 // loop_body
      %s17 = ssub.s32 %s12, 1
      %s18 = ssub.s32 %s12, 2
      %s25 = sadd.s32 1, %s20
      %p26 = scmp.ge.s32.totalorder %s25, 1
      %s27 = scalar_select %p26, 0, %s25
      %s28 = sadd.s32 1, %s19
      %s29 = scalar_select %p26, %s28, %s19
      %p30 = scmp.ge.s32.totalorder %s29, 2
      %s31 = scalar_select %p30, 0, %s29
      %s32 = ssub.s32 %s19, %s31
      %s33 = ssub.s32 %s20, %s27
      %s34 = sor.u32 %s32, %s33
      %p35 = scmp.eq.s32.totalorder %s34, 0
      %s37 = sadd.s32 %s36, 1
      %s38 = scalar_select %p35, %s36, %s37
      %p41 = pneg %p35
      %p42 = scmp.eq.s32.totalorder %s12, 1
      %p43 = por %p41, %p42
      %p44 = scmp.ne.s32.totalorder %s36, %s39
      %p45 = scmp.eq.s32.totalorder %s12, 0
      %p46 = por %p44, %p45
      %p47 = scmp.ne.s32.totalorder %s36, %s39
      %p48 = scmp.eq.s32.totalorder %s17, 1
      %p49 = por %p47, %p48
      %p50 = scmp.ne.s32.totalorder %s39, %s40
      %p51 = scmp.eq.s32.totalorder %s17, 0
      %p52 = por %p50, %p51
      %p53 = scmp.ne.s32.totalorder %s39, %s40
      %p54 = scmp.eq.s32.totalorder %s18, 1
      %p55 = por %p53, %p54
      %p57 = scmp.ne.s32.totalorder %s40, %s56
      %p58 = scmp.eq.s32.totalorder %s18, 0
      %p59 = por %p57, %p58
      %s61 = sadd.s32 %s60, 1
      %p64 = scmp.eq.s32.totalorder %s12, 1
      %p65 = scmp.ne.s32.totalorder %s60, %s62
      %p66 = scmp.eq.s32.totalorder %s12, 0
      %p67 = por %p65, %p66
      %p68 = scmp.ne.s32.totalorder %s60, %s62
      %p69 = scmp.eq.s32.totalorder %s17, 1
      %p70 = por %p68, %p69
      %p71 = scmp.ne.s32.totalorder %s62, %s63
      %p72 = scmp.eq.s32.totalorder %s17, 0
      %p73 = por %p71, %p72
      %p74 = scmp.ne.s32.totalorder %s62, %s63
      %p75 = scmp.eq.s32.totalorder %s18, 1
      %p76 = por %p74, %p75
      %p78 = scmp.ne.s32.totalorder %s63, %s77
      %p79 = scmp.eq.s32.totalorder %s18, 0
      %p80 = por %p78, %p79
      %s82 = sadd.s32 %s81, 1
      %p85 = scmp.eq.s32.totalorder %s12, 1
      %p86 = scmp.ne.s32.totalorder %s81, %s83
      %p87 = scmp.eq.s32.totalorder %s12, 0
      %p88 = por %p86, %p87
      %p89 = scmp.ne.s32.totalorder %s81, %s83
      %p90 = scmp.eq.s32.totalorder %s17, 1
      %p91 = por %p89, %p90
      %p92 = scmp.ne.s32.totalorder %s83, %s84
      %p93 = scmp.eq.s32.totalorder %s17, 0
      %p94 = por %p92, %p93
      %p95 = scmp.ne.s32.totalorder %s83, %s84
      %p96 = scmp.eq.s32.totalorder %s18, 1
      %p97 = por %p95, %p96
      %p99 = scmp.ne.s32.totalorder %s84, %s98
      %p100 = scmp.eq.s32.totalorder %s18, 0
      %p101 = por %p99, %p100
      %s102 = ssub.s32 %s19, %s31
      %s103 = ssub.s32 %s20, %s27
      %s104 = sor.u32 %s102, %s103
      %p105 = scmp.eq.s32.totalorder %s104, 0
      %s107 = sadd.s32 %s106, 1
      %s108 = scalar_select %p105, %s106, %s107
      %p111 = pneg %p105
      %p112 = scmp.eq.s32.totalorder %s12, 1
      %p113 = por %p111, %p112
      %p114 = scmp.ne.s32.totalorder %s106, %s109
      %p115 = scmp.eq.s32.totalorder %s12, 0
      %p116 = por %p114, %p115
      %p117 = scmp.ne.s32.totalorder %s106, %s109
      %p118 = scmp.eq.s32.totalorder %s17, 1
      %p119 = por %p117, %p118
      %p120 = scmp.ne.s32.totalorder %s109, %s110
      %p121 = scmp.eq.s32.totalorder %s17, 0
      %p122 = por %p120, %p121
      %p123 = scmp.ne.s32.totalorder %s109, %s110
      %p124 = scmp.eq.s32.totalorder %s18, 1
      %p125 = por %p123, %p124
      %p127 = scmp.ne.s32.totalorder %s110, %s126
      %p128 = scmp.eq.s32.totalorder %s18, 0
      %p129 = por %p127, %p128
      %p130 = scmp.le.s32.totalorder 1, %s12
      %p131 = scmp.lt.s32.totalorder %s12, 3
      %p132 = pnand %p130, %p131
      %p133 = pneg %p132
      // Predicated region
      $region9: #{tpu_custom_call.1} parent=5 // pred_check
        _
      $region10: #{tpu_custom_call.1} parent=5 // pred_check_branch
        %135 = sbr.rel (%p132) target = $region12
      $region11: #{tpu_custom_call.1} parent=5 // pred_region
        %s136 = ssub.s32 %s12, 1
        // Predicated region
        $region13: #{tpu_custom_call.1} parent=11 // pred_check
          %p137 = pneg %p73
        $region14: #{tpu_custom_call.1} parent=11 // pred_check_branch
          %139 = sbr.rel (%p137) target = $region16
        $region15: #{tpu_custom_call.1} parent=11 // pred_region
          _
        $region16: #{tpu_custom_call.1} parent=11 // pred_fallthru
          _
        // Predicated region
        $region17: #{tpu_custom_call.1} parent=11 // pred_check
          %p140 = pneg %p94
        $region18: #{tpu_custom_call.1} parent=11 // pred_check_branch
          %142 = sbr.rel (%p140) target = $region20
        $region19: #{tpu_custom_call.1} parent=11 // pred_region
          _
        $region20: #{tpu_custom_call.1} parent=11 // pred_fallthru
          _
      $region12: #{tpu_custom_call.1} parent=5 // pred_fallthru
        _
      %p143 = scmp.lt.s32.totalorder %s12, 2
      // Predicated region
      $region21: #{tpu_custom_call.1} parent=5 // pred_check
        %p144 = pneg %p143
      $region22: #{tpu_custom_call.1} parent=5 // pred_check_branch
        %146 = sbr.rel (%p144) target = $region24
      $region23: #{tpu_custom_call.1} parent=5 // pred_region
        // Predicated region
        $region25: #{tpu_custom_call.1} parent=23 // pred_check
          %p147 = pneg %p46
        $region26: #{tpu_custom_call.1} parent=23 // pred_check_branch
          %149 = sbr.rel (%p147) target = $region28
        $region27: #{tpu_custom_call.1} parent=23 // pred_region
          %p150 = scmp.lt.s32.totalorder %s19, 1
          %s151 = scalar_select %p150, %s19, 1
          %p152 = scmp.lt.s32.totalorder %s20, 0
          %s153 = scalar_select %p152, %s20, 0
          %s154 = smul.addr %s153, 2
          %s155 = smul.addr %s151, 12
          %s156 = sadd.s32 %s154, %s155
          %s157 = smul.addr %s156, 2
          %s158 = scalar_lea.vmem %s0, %s157
        $region28: #{tpu_custom_call.1} parent=23 // pred_fallthru
          _
      $region24: #{tpu_custom_call.1} parent=5 // pred_fallthru
        _
      %p159 = scmp.le.s32.totalorder 1, %s12
      %p160 = scmp.lt.s32.totalorder %s12, 3
      %p161 = pnand %p159, %p160
      %p162 = pneg %p161
      // Predicated region
      $region29: #{tpu_custom_call.1} parent=5 // pred_check
        _
      $region30: #{tpu_custom_call.1} parent=5 // pred_check_branch
        %164 = sbr.rel (%p161) target = $region32
      $region31: #{tpu_custom_call.1} parent=5 // pred_region
        %s165 = ssub.s32 %s12, 1
        %p166 = scmp.lt.s32.totalorder %s21, 1
        %s167 = scalar_select %p166, %s21, 1
        %p168 = scmp.lt.s32.totalorder %s22, 0
        %s169 = scalar_select %p168, %s22, 0
        %s170 = smul.addr %s169, 2
        %s171 = smul.addr %s167, 12
        %s172 = sadd.s32 %s170, %s171
        %s173 = smul.addr %s172, 2
        %s174 = scalar_lea.vmem %s0, %s173
        %p175 = pneg %p52
        %p176 = pneg %p49
        %p177 = pneg %p73
        %p178 = pneg %p70
        %p179 = pneg %p94
        %p180 = pneg %p91
        %p181 = pneg %p122
        %p182 = pneg %p119
        %s183 = sand.u32 %s109, 1
        %s184 = scalar_lea.sflag [#allocation3], %s183
        %s185 = sand.u32 %s109, 1
        %s186 = smul.addr %s185, 32
        %s187 = scalar_lea.vmem [#allocation2], %s186
        %p188 = scmp.lt.s32.totalorder %s21, 1
        %s189 = scalar_select %p188, %s21, 1
        %p190 = scmp.lt.s32.totalorder %s22, 0
        %s191 = scalar_select %p190, %s22, 0
        %s192 = smul.addr %s191, 2
        %s193 = smul.addr %s189, 12
        %s194 = sadd.s32 %s192, %s193
        %s195 = smul.addr %s194, 2
        %s196 = scalar_lea.vmem %s0, %s195
        %v198 = vld [vmem:[%s196] sm:$0x3]
        %v199 = vld [vmem:[%s1] sm:$0xf]
        %v200 = vld [vmem:[%s1 + $0x4] sm:$0xf]
        %v201 = vld [vmem:[%s1 + $0x8] sm:$0xf]
        %v202 = vld [vmem:[%s1 + $0xc] sm:$0xf]
        %s203 = scalar_lea.vmem %s196, 4
        %v204 = vld [vmem:[%s203] sm:$0x3]
        %s205 = scalar_lea.vmem %s1, 16
        %v206 = vld [vmem:[%s205] sm:$0xf]
        %v207 = vld [vmem:[%s205 + $0x4] sm:$0xf]
        %v208 = vld [vmem:[%s205 + $0x8] sm:$0xf]
        %v209 = vld [vmem:[%s205 + $0xc] sm:$0xf]
        %v214 = vunpack.c.l.b16 %v206
        %v215 = vunpack.c.l.b16 %v207
        %v216 = vunpack.c.l.b16 %v208
        %v217 = vunpack.c.l.b16 %v209
        %v218 = vpack.c.b16 %v215, %v214
        %v219 = vpack.c.b16 %v217, %v216
        %vm220 = vcmask 31744
        %v222 = vsel %vm220, %v218, 0
        %v225 = vsel %vm220, %v219, 0
        %vm227 = vcmask 1041408
        %v229 = vsel %vm227, %v204, 0
        %231 = vmatpush.bf16.msra.mxu0 0
        %232 = vmatpush.bf16.msra.mxu0 0
        %233 = vmatpush.bf16.msra.mxu0 0
        %234 = vmatpush.bf16.msra.mxu0 0
        %235 = vmatpush.bf16.msra.mxu0 0
        %236 = vmatpush.bf16.msra.mxu0 0
        %237 = vmatpush.bf16.msra.mxu0 0
        %238 = vmatpush.bf16.msra.mxu0 %v229
        %239 = vmatmul.bf16.gmra.mxu0 %v222
        %v240 = vpop.f32.mrf.mxu0
        %v241 = vadd.f32 0.0, %v240
        %v242 = vpop.f32.mrf.mxu0
        %v243 = vadd.f32 0.0, %v242
        %244 = vmatmul.bf16.gmra.mxu0 %v225
        %v245 = vpop.f32.mrf.mxu0
        %v246 = vadd.f32 0.0, %v245
        %v247 = vpop.f32.mrf.mxu0
        %v248 = vadd.f32 0.0, %v247
        %249 = vdwg.mxu0
        %v254 = vunpack.c.l.b16 %v199
        %v255 = vunpack.c.l.b16 %v200
        %v256 = vunpack.c.l.b16 %v201
        %v257 = vunpack.c.l.b16 %v202
        %v258 = vpack.c.b16 %v255, %v254
        %v259 = vpack.c.b16 %v257, %v256
        %v261 = vsel %vm220, %v258, 0
        %v264 = vsel %vm220, %v259, 0
        %v267 = vsel %vm227, %v198, 0
        %269 = vmatpush.bf16.msra.mxu0 0
        %270 = vmatpush.bf16.msra.mxu0 0
        %271 = vmatpush.bf16.msra.mxu0 0
        %272 = vmatpush.bf16.msra.mxu0 0
        %273 = vmatpush.bf16.msra.mxu0 0
        %274 = vmatpush.bf16.msra.mxu0 0
        %275 = vmatpush.bf16.msra.mxu0 0
        %276 = vmatpush.bf16.msra.mxu0 %v267
        %277 = vmatmul.bf16.gmra.mxu0 %v261
        %v278 = vpop.f32.mrf.mxu0
        %v279 = vadd.f32 %v241, %v278
        %v280 = vpop.f32.mrf.mxu0
        %v281 = vadd.f32 %v243, %v280
        %282 = vmatmul.bf16.gmra.mxu0 %v264
        %v283 = vpop.f32.mrf.mxu0
        %v284 = vadd.f32 %v246, %v283
        %v285 = vpop.f32.mrf.mxu0
        %v286 = vadd.f32 %v248, %v285
        %287 = vdwg.mxu0
        %s288 = scalar_lea.vmem %s196, 8
        %v289 = vld [vmem:[%s288] sm:$0x3]
        %s290 = scalar_lea.vmem %s1, 32
        %v291 = vld [vmem:[%s290] sm:$0xf]
        %v292 = vld [vmem:[%s290 + $0x4] sm:$0xf]
        %v293 = vld [vmem:[%s290 + $0x8] sm:$0xf]
        %v294 = vld [vmem:[%s290 + $0xc] sm:$0xf]
        %v299 = vunpack.c.l.b16 %v291
        %v300 = vunpack.c.l.b16 %v292
        %v301 = vunpack.c.l.b16 %v293
        %v302 = vunpack.c.l.b16 %v294
        %v303 = vpack.c.b16 %v300, %v299
        %v304 = vpack.c.b16 %v302, %v301
        %v306 = vsel %vm220, %v303, 0
        %v309 = vsel %vm220, %v304, 0
        %v312 = vsel %vm227, %v289, 0
        %314 = vmatpush.bf16.msra.mxu0 0
        %315 = vmatpush.bf16.msra.mxu0 0
        %316 = vmatpush.bf16.msra.mxu0 0
        %317 = vmatpush.bf16.msra.mxu0 0
        %318 = vmatpush.bf16.msra.mxu0 0
        %319 = vmatpush.bf16.msra.mxu0 0
        %320 = vmatpush.bf16.msra.mxu0 0
        %321 = vmatpush.bf16.msra.mxu0 %v312
        %322 = vmatmul.bf16.gmra.mxu0 %v306
        %v323 = vpop.f32.mrf.mxu0
        %v324 = vadd.f32 0.0, %v323
        %v325 = vpop.f32.mrf.mxu0
        %v326 = vadd.f32 0.0, %v325
        %327 = vmatmul.bf16.gmra.mxu0 %v309
        %v328 = vpop.f32.mrf.mxu0
        %v329 = vadd.f32 0.0, %v328
        %v330 = vpop.f32.mrf.mxu0
        %v331 = vadd.f32 0.0, %v330
        %332 = vdwg.mxu0
        %v333 = vadd.f32 %v279, %v324
        %v334 = vadd.f32 %v281, %v326
        %v335 = vadd.f32 %v284, %v329
        %v336 = vadd.f32 %v286, %v331
        %s337 = scalar_lea.vmem %s196, 12
        %v338 = vld [vmem:[%s337] sm:$0x3]
        %s339 = scalar_lea.vmem %s1, 48
        %v340 = vld [vmem:[%s339] sm:$0xf]
        %v341 = vld [vmem:[%s339 + $0x4] sm:$0xf]
        %v342 = vld [vmem:[%s339 + $0x8] sm:$0xf]
        %v343 = vld [vmem:[%s339 + $0xc] sm:$0xf]
        %v348 = vunpack.c.l.b16 %v340
        %v349 = vunpack.c.l.b16 %v341
        %v350 = vunpack.c.l.b16 %v342
        %v351 = vunpack.c.l.b16 %v343
        %v352 = vpack.c.b16 %v349, %v348
        %v353 = vpack.c.b16 %v351, %v350
        %v355 = vsel %vm220, %v352, 0
        %v358 = vsel %vm220, %v353, 0
        %v361 = vsel %vm227, %v338, 0
        %363 = vmatpush.bf16.msra.mxu0 0
        %364 = vmatpush.bf16.msra.mxu0 0
        %365 = vmatpush.bf16.msra.mxu0 0
        %366 = vmatpush.bf16.msra.mxu0 0
        %367 = vmatpush.bf16.msra.mxu0 0
        %368 = vmatpush.bf16.msra.mxu0 0
        %369 = vmatpush.bf16.msra.mxu0 0
        %370 = vmatpush.bf16.msra.mxu0 %v361
        %371 = vmatmul.bf16.gmra.mxu0 %v355
        %v372 = vpop.f32.mrf.mxu0
        %v373 = vadd.f32 0.0, %v372
        %v374 = vpop.f32.mrf.mxu0
        %v375 = vadd.f32 0.0, %v374
        %376 = vmatmul.bf16.gmra.mxu0 %v358
        %v377 = vpop.f32.mrf.mxu0
        %v378 = vadd.f32 0.0, %v377
        %v379 = vpop.f32.mrf.mxu0
        %v380 = vadd.f32 0.0, %v379
        %381 = vdwg.mxu0
        %v382 = vadd.f32 %v333, %v373
        %v383 = vadd.f32 %v334, %v375
        %v384 = vadd.f32 %v335, %v378
        %v385 = vadd.f32 %v336, %v380
        %s386 = scalar_lea.vmem %s196, 16
        %v387 = vld [vmem:[%s386] sm:$0x3]
        %s388 = scalar_lea.vmem %s1, 64
        %v389 = vld [vmem:[%s388] sm:$0xf]
        %v390 = vld [vmem:[%s388 + $0x4] sm:$0xf]
        %v391 = vld [vmem:[%s388 + $0x8] sm:$0xf]
        %v392 = vld [vmem:[%s388 + $0xc] sm:$0xf]
        %v397 = vunpack.c.l.b16 %v389
        %v398 = vunpack.c.l.b16 %v390
        %v399 = vunpack.c.l.b16 %v391
        %v400 = vunpack.c.l.b16 %v392
        %v401 = vpack.c.b16 %v398, %v397
        %v402 = vpack.c.b16 %v400, %v399
        %v404 = vsel %vm220, %v401, 0
        %v407 = vsel %vm220, %v402, 0
        %v410 = vsel %vm227, %v387, 0
        %412 = vmatpush.bf16.msra.mxu0 0
        %413 = vmatpush.bf16.msra.mxu0 0
        %414 = vmatpush.bf16.msra.mxu0 0
        %415 = vmatpush.bf16.msra.mxu0 0
        %416 = vmatpush.bf16.msra.mxu0 0
        %417 = vmatpush.bf16.msra.mxu0 0
        %418 = vmatpush.bf16.msra.mxu0 0
        %419 = vmatpush.bf16.msra.mxu0 %v410
        %420 = vmatmul.bf16.gmra.mxu0 %v404
        %v421 = vpop.f32.mrf.mxu0
        %v422 = vadd.f32 0.0, %v421
        %v423 = vpop.f32.mrf.mxu0
        %v424 = vadd.f32 0.0, %v423
        %425 = vmatmul.bf16.gmra.mxu0 %v407
        %v426 = vpop.f32.mrf.mxu0
        %v427 = vadd.f32 0.0, %v426
        %v428 = vpop.f32.mrf.mxu0
        %v429 = vadd.f32 0.0, %v428
        %430 = vdwg.mxu0
        %v431 = vadd.f32 %v382, %v422
        %v432 = vadd.f32 %v383, %v424
        %v433 = vadd.f32 %v384, %v427
        %v434 = vadd.f32 %v385, %v429
        %s435 = scalar_lea.vmem %s196, 20
        %v436 = vld [vmem:[%s435] sm:$0x3]
        %s437 = scalar_lea.vmem %s1, 80
        %v438 = vld [vmem:[%s437] sm:$0xf]
        %v439 = vld [vmem:[%s437 + $0x4] sm:$0xf]
        %v440 = vld [vmem:[%s437 + $0x8] sm:$0xf]
        %v441 = vld [vmem:[%s437 + $0xc] sm:$0xf]
        %v446 = vunpack.c.l.b16 %v438
        %v447 = vunpack.c.l.b16 %v439
        %v448 = vunpack.c.l.b16 %v440
        %v449 = vunpack.c.l.b16 %v441
        %v450 = vpack.c.b16 %v447, %v446
        %v451 = vpack.c.b16 %v449, %v448
        %v453 = vsel %vm220, %v450, 0
        %v456 = vsel %vm220, %v451, 0
        %v459 = vsel %vm227, %v436, 0
        %461 = vmatpush.bf16.msra.mxu0 0
        %462 = vmatpush.bf16.msra.mxu0 0
        %463 = vmatpush.bf16.msra.mxu0 0
        %464 = vmatpush.bf16.msra.mxu0 0
        %465 = vmatpush.bf16.msra.mxu0 0
        %466 = vmatpush.bf16.msra.mxu0 0
        %467 = vmatpush.bf16.msra.mxu0 0
        %468 = vmatpush.bf16.msra.mxu0 %v459
        %469 = vmatmul.bf16.gmra.mxu0 %v453
        %v470 = vpop.f32.mrf.mxu0
        %v471 = vadd.f32 0.0, %v470
        %v472 = vpop.f32.mrf.mxu0
        %v473 = vadd.f32 0.0, %v472
        %474 = vmatmul.bf16.gmra.mxu0 %v456
        %v475 = vpop.f32.mrf.mxu0
        %v476 = vadd.f32 0.0, %v475
        %v477 = vpop.f32.mrf.mxu0
        %v478 = vadd.f32 0.0, %v477
        %479 = vdwg.mxu0
        %v480 = vadd.f32 %v431, %v471
        %v481 = vadd.f32 %v432, %v473
        %v482 = vadd.f32 %v433, %v476
        %v483 = vadd.f32 %v434, %v478
        %v484 = vld [vmem:[%s196] sm:$0xf]
        %s485 = scalar_lea.vmem %s1, 96
        %v486 = vld [vmem:[%s485] sm:$0xf]
        %v487 = vld [vmem:[%s485 + $0x4] sm:$0xf]
        %v488 = vld [vmem:[%s485 + $0x8] sm:$0xf]
        %v489 = vld [vmem:[%s485 + $0xc] sm:$0xf]
        %v494 = vunpack.c.l.b16 %v486
        %v495 = vunpack.c.l.b16 %v487
        %v496 = vunpack.c.l.b16 %v488
        %v497 = vunpack.c.l.b16 %v489
        %v498 = vpack.c.b16 %v495, %v494
        %v499 = vpack.c.b16 %v497, %v496
        %501 = vst [vmem:[#allocation1] ss:$4 sm:$0xff] %v484
        %v502 = vld.sshfl [vmem:[#allocation1] sm:$0xff pattern:$0x73625140]
        %v504 = vld.sshfl [vmem:[#allocation1 + $0x8] sm:$0xff pattern:$0x73625140]
        %506 = vrot.lane.b32.xlu0 %v502, 120
        %v507 = vpop.permute.xlu0 %506
        %508 = vrot.lane.b32.xlu0 %v504, 120
        %v509 = vpop.permute.xlu0 %508
        %vm510 = vcmask 982016
        %v511 = vsel %vm510, %v507, %v509
        %v513 = vsel %vm220, %v498, 0
        %v516 = vsel %vm220, %v499, 0
        %v519 = vsel %vm227, %v511, 0
        %521 = vmatpush.bf16.msra.mxu0 0
        %522 = vmatpush.bf16.msra.mxu0 0
        %523 = vmatpush.bf16.msra.mxu0 0
        %524 = vmatpush.bf16.msra.mxu0 0
        %525 = vmatpush.bf16.msra.mxu0 0
        %526 = vmatpush.bf16.msra.mxu0 0
        %527 = vmatpush.bf16.msra.mxu0 0
        %528 = vmatpush.bf16.msra.mxu0 %v519
        %529 = vmatmul.bf16.gmra.mxu0 %v513
        %v530 = vpop.f32.mrf.mxu0
        %v531 = vadd.f32 0.0, %v530
        %v532 = vpop.f32.mrf.mxu0
        %v533 = vadd.f32 0.0, %v532
        %534 = vmatmul.bf16.gmra.mxu0 %v516
        %v535 = vpop.f32.mrf.mxu0
        %v536 = vadd.f32 0.0, %v535
        %v537 = vpop.f32.mrf.mxu0
        %v538 = vadd.f32 0.0, %v537
        %539 = vdwg.mxu0
        %v540 = vadd.f32 %v480, %v531
        %v541 = vadd.f32 %v481, %v533
        %v542 = vadd.f32 %v482, %v536
        %v543 = vadd.f32 %v483, %v538
        %v544 = vld [vmem:[%s203] sm:$0xf]
        %s545 = scalar_lea.vmem %s1, 112
        %v546 = vld [vmem:[%s545] sm:$0xf]
        %v547 = vld [vmem:[%s545 + $0x4] sm:$0xf]
        %v548 = vld [vmem:[%s545 + $0x8] sm:$0xf]
        %v549 = vld [vmem:[%s545 + $0xc] sm:$0xf]
        %v554 = vunpack.c.l.b16 %v546
        %v555 = vunpack.c.l.b16 %v547
        %v556 = vunpack.c.l.b16 %v548
        %v557 = vunpack.c.l.b16 %v549
        %v558 = vpack.c.b16 %v555, %v554
        %v559 = vpack.c.b16 %v557, %v556
        %561 = vst [vmem:[#allocation1] ss:$4 sm:$0xff] %v544
        %v562 = vld.sshfl [vmem:[#allocation1] sm:$0xff pattern:$0x73625140]
        %v564 = vld.sshfl [vmem:[#allocation1 + $0x8] sm:$0xff pattern:$0x73625140]
        %566 = vrot.lane.b32.xlu0 %v562, 120
        %v567 = vpop.permute.xlu0 %566
        %568 = vrot.lane.b32.xlu0 %v564, 120
        %v569 = vpop.permute.xlu0 %568
        %v570 = vsel %vm510, %v567, %v569
        %v572 = vsel %vm220, %v558, 0
        %v575 = vsel %vm220, %v559, 0
        %v578 = vsel %vm227, %v570, 0
        %580 = vmatpush.bf16.msra.mxu0 0
        %581 = vmatpush.bf16.msra.mxu0 0
        %582 = vmatpush.bf16.msra.mxu0 0
        %583 = vmatpush.bf16.msra.mxu0 0
        %584 = vmatpush.bf16.msra.mxu0 0
        %585 = vmatpush.bf16.msra.mxu0 0
        %586 = vmatpush.bf16.msra.mxu0 0
        %587 = vmatpush.bf16.msra.mxu0 %v578
        %588 = vmatmul.bf16.gmra.mxu0 %v572
        %v589 = vpop.f32.mrf.mxu0
        %v590 = vadd.f32 0.0, %v589
        %v591 = vpop.f32.mrf.mxu0
        %v592 = vadd.f32 0.0, %v591
        %593 = vmatmul.bf16.gmra.mxu0 %v575
        %v594 = vpop.f32.mrf.mxu0
        %v595 = vadd.f32 0.0, %v594
        %v596 = vpop.f32.mrf.mxu0
        %v597 = vadd.f32 0.0, %v596
        %598 = vdwg.mxu0
        %v599 = vadd.f32 %v540, %v590
        %v600 = vadd.f32 %v541, %v592
        %v601 = vadd.f32 %v542, %v595
        %v602 = vadd.f32 %v543, %v597
        %v603 = vld [vmem:[%s288] sm:$0xf]
        %s604 = scalar_lea.vmem %s1, 128
        %v605 = vld [vmem:[%s604] sm:$0xf]
        %v606 = vld [vmem:[%s604 + $0x4] sm:$0xf]
        %v607 = vld [vmem:[%s604 + $0x8] sm:$0xf]
        %v608 = vld [vmem:[%s604 + $0xc] sm:$0xf]
        %v613 = vunpack.c.l.b16 %v605
        %v614 = vunpack.c.l.b16 %v606
        %v615 = vunpack.c.l.b16 %v607
        %v616 = vunpack.c.l.b16 %v608
        %v617 = vpack.c.b16 %v614, %v613
        %v618 = vpack.c.b16 %v616, %v615
        %620 = vst [vmem:[#allocation1] ss:$4 sm:$0xff] %v603
        %v621 = vld.sshfl [vmem:[#allocation1] sm:$0xff pattern:$0x73625140]
        %v623 = vld.sshfl [vmem:[#allocation1 + $0x8] sm:$0xff pattern:$0x73625140]
        %625 = vrot.lane.b32.xlu0 %v621, 120
        %v626 = vpop.permute.xlu0 %625
        %627 = vrot.lane.b32.xlu0 %v623, 120
        %v628 = vpop.permute.xlu0 %627
        %v629 = vsel %vm510, %v626, %v628
        %v631 = vsel %vm220, %v617, 0
        %v634 = vsel %vm220, %v618, 0
        %v637 = vsel %vm227, %v629, 0
        %639 = vmatpush.bf16.msra.mxu0 0
        %640 = vmatpush.bf16.msra.mxu0 0
        %641 = vmatpush.bf16.msra.mxu0 0
        %642 = vmatpush.bf16.msra.mxu0 0
        %643 = vmatpush.bf16.msra.mxu0 0
        %644 = vmatpush.bf16.msra.mxu0 0
        %645 = vmatpush.bf16.msra.mxu0 0
        %646 = vmatpush.bf16.msra.mxu0 %v637
        %647 = vmatmul.bf16.gmra.mxu0 %v631
        %v648 = vpop.f32.mrf.mxu0
        %v649 = vadd.f32 0.0, %v648
        %v650 = vpop.f32.mrf.mxu0
        %v651 = vadd.f32 0.0, %v650
        %652 = vmatmul.bf16.gmra.mxu0 %v634
        %v653 = vpop.f32.mrf.mxu0
        %v654 = vadd.f32 0.0, %v653
        %v655 = vpop.f32.mrf.mxu0
        %v656 = vadd.f32 0.0, %v655
        %657 = vdwg.mxu0
        %v658 = vadd.f32 %v599, %v649
        %v659 = vadd.f32 %v600, %v651
        %v660 = vadd.f32 %v601, %v654
        %v661 = vadd.f32 %v602, %v656
        %v662 = vld [vmem:[%s2] sm:$0xff]
        %v663 = vld [vmem:[%s2 + $0x8] sm:$0xff]
        %v664 = vld [vmem:[%s2 + $0x10] sm:$0xff]
        %v665 = vld [vmem:[%s2 + $0x18] sm:$0xff]
        %667 = vset.pattern.permute.xlu0 0
        %668 = vperm.xlu0 %667, %v662
        %v669 = vpop.permute.xlu0 %668
        %672 = vset.pattern.permute.xlu0 0
        %673 = vperm.xlu0 %672, %v663
        %v674 = vpop.permute.xlu0 %673
        %677 = vset.pattern.permute.xlu0 0
        %678 = vperm.xlu0 %677, %v664
        %v679 = vpop.permute.xlu0 %678
        %682 = vset.pattern.permute.xlu0 0
        %683 = vperm.xlu0 %682, %v665
        %v684 = vpop.permute.xlu0 %683
        %v686 = vadd.f32 %v658, %v669
        %v687 = vadd.f32 %v659, %v674
        %v688 = vadd.f32 %v660, %v679
        %v689 = vadd.f32 %v661, %v684
        %v690 = vmax.f32 %v686, 0.0
        %v691 = vmax.f32 %v687, 0.0
        %v692 = vmax.f32 %v688, 0.0
        %v693 = vmax.f32 %v689, 0.0
        %694 = vst [vmem:[%s187] sm:$0xff] %v690
        %695 = vst [vmem:[%s187 + $0x8] sm:$0xff] %v691
        %696 = vst [vmem:[%s187 + $0x10] sm:$0xff] %v692
        %697 = vst [vmem:[%s187 + $0x18] sm:$0xff] %v693
        %s698 = sand.u32 %s109, 1
        %s699 = scalar_lea.sflag [#allocation3], %s698
        %s700 = sand.u32 %s109, 1
        %s701 = smul.addr %s700, 32
        %s702 = scalar_lea.vmem [#allocation2], %s701
        // Predicated region
        $region33: #{tpu_custom_call.1} parent=31 // pred_check
          %p703 = pneg %p119
        $region34: #{tpu_custom_call.1} parent=31 // pred_check_branch
          %705 = sbr.rel (%p703) target = $region36
        $region35: #{tpu_custom_call.1} parent=31 // pred_region
          %707 = vsyncadd %s699, 0
          %s708 = smul.addr %s21, 4
          %s709 = sadd.s32 %s22, %s708
          %s710 = smul.addr %s709, 8
          %s711 = scalar_lea.hbm %s3, %s710
          %s712 = sshll.u32 %s702, 4
          %s713 = int_to_ptr.vmem [resolvable:$true] %s712
          %s714 = sshll.u32 %s711, 4
          %s715 = int_to_ptr.hbm [resolvable:$true] %s714
          %720 = dma.vmem_to_hbm [thread:$0]  %s713, 512, %s715, %s699, 128, 128, 8
        $region36: #{tpu_custom_call.1} parent=31 // pred_fallthru
          _
      $region32: #{tpu_custom_call.1} parent=5 // pred_fallthru
        _
      %p721 = scmp.le.s32.totalorder 2, %s12
      // Predicated region
      $region37: #{tpu_custom_call.1} parent=5 // pred_check
        %p722 = pneg %p721
      $region38: #{tpu_custom_call.1} parent=5 // pred_check_branch
        %724 = sbr.rel (%p722) target = $region40
      $region39: #{tpu_custom_call.1} parent=5 // pred_region
        %s725 = ssub.s32 %s12, 2
        // Predicated region
        $region41: #{tpu_custom_call.1} parent=39 // pred_check
          %p726 = pneg %p125
        $region42: #{tpu_custom_call.1} parent=39 // pred_check_branch
          %728 = sbr.rel (%p726) target = $region44
        $region43: #{tpu_custom_call.1} parent=39 // pred_region
          %s729 = sand.u32 %s110, 1
          %s730 = scalar_lea.sflag [#allocation3], %s729
          %s731 = sand.u32 %s110, 1
          %s732 = smul.addr %s731, 32
          %s733 = scalar_lea.vmem [#allocation2], %s732
          %735 = dma.done %s730, 512
        $region44: #{tpu_custom_call.1} parent=39 // pred_fallthru
          _
      $region40: #{tpu_custom_call.1} parent=5 // pred_fallthru
        _
    $region6: #{tpu_custom_call.1} parent=1 // loop_footer
      %s16 = sadd.s32 1, %s12
    $region7: #{tpu_custom_call.1} parent=1 // loop_footer_branch
      %11 = sbr.rel target = $region3
    $region8: #{tpu_custom_call.1} parent=1 // loop_exit
      _
    %736 = vsyncpa [#allocation3], 1
    %s737 = scalar_lea.sflag [#allocation3], 1
    %738 = vsyncpa %s737, 1

</llo_original>
